<compile_context>
chip_gen: v5e
topology: v5e:2x2
jax: 0.10.0
libtpu: 0.0.40
codegen_flags: <defaults>
</compile_context>

<pallas_src>
import jax
import jax.numpy as jnp
from jax import lax
from jax.experimental import pallas as pl
from jax.experimental.pallas import tpu as pltpu

K_CONST = 30000.0
_LANE = 128
_SUBLANE = 8


def _round_up(x: int, m: int) -> int:
    return ((x + m - 1) // m) * m


def _make_smrr_kernel(anneal: float):
    inv_temp = 1.0 / float(anneal)

    def kernel(preds_ref, labels_ref, out_ref):
        # preds tile in native dtype; upcast in-register (free vs. the DMA cost).
        preds = preds_ref[...].astype(jnp.float32)            # (TB, N)
        labels = labels_ref[...]                              # (TB, 1) int32
        tb, n = preds.shape

        # label_value[i] = preds[i, labels[i]]  (one-hot masked row reduce; XLU)
        col = lax.broadcasted_iota(jnp.int32, (tb, n), 1)
        label_value = jnp.sum(jnp.where(col == labels, preds, 0.0),
                              axis=-1, keepdims=True)          # (TB, 1)

        # temperature-controlled sigmoid of score differences, exponent clamped.
        # -(preds - label_value)/temp written as (label_value - preds)*inv_temp.
        exponent = jnp.clip((label_value - preds) * inv_temp, -50.0, 50.0)
        # exp + approx reciprocal both go to the EUP slot -> frees VALU,
        # keeps the kernel HBM-bound.
        sim_sg = pl.reciprocal(1.0 + jnp.exp(exponent), approx=True)

        # soft rank and per-row MRR surrogate (TB elements -> exact divides)
        r = jnp.sum(sim_sg, axis=-1, keepdims=True) + 1.0      # (TB, 1)
        k = K_CONST
        out_ref[...] = (k * (1.0 - 1.0 / r) + r * jnp.log(r)) / (r + k)

    return kernel


def _choose_block_b(batch: int, num_items: int, itemsize: int) -> int:
    """Rows per tile so one pipelined preds buffer stays around ~4 MiB."""
    target_tile_bytes = 4 * 1024 * 1024
    # per-row VMEM bytes: preds row + lane-padded (TB,1) labels and output blocks
    bytes_per_row = num_items * itemsize + 2 * _LANE * 4
    tb = max(_SUBLANE, (target_tile_bytes // bytes_per_row) // _SUBLANE * _SUBLANE)
    tb = min(tb, 2048, _round_up(batch, _SUBLANE))
    return int(tb)


def smrr_loss_pallas(preds: jax.Array, labels: jax.Array, anneal: float,
                     *, block_b: int | None = None) -> jax.Array:
    """preds: (B, N) float (any float dtype), labels: (B,) int -> scalar f32 loss."""
    B, N = preds.shape
    itemsize = jnp.dtype(preds.dtype).itemsize

    if block_b is None:
        block_b = _choose_block_b(B, N, itemsize)
    block_b = max(_SUBLANE, _round_up(int(block_b), _SUBLANE))
    block_b = min(block_b, _round_up(B, _SUBLANE))

    labels2d = labels.reshape(B, 1).astype(jnp.int32)
    # Ragged grid: no HBM-copying pad of preds.  Out-of-bounds rows of the last
    # tile produce unspecified (row-local) values that are never written back.
    num_tiles = pl.cdiv(B, block_b)

    per_row = pl.pallas_call(
        _make_smrr_kernel(anneal),
        out_shape=jax.ShapeDtypeStruct((B, 1), jnp.float32),
        grid_spec=pltpu.PrefetchScalarGridSpec(
            num_scalar_prefetch=0,
            grid=(num_tiles,),
            in_specs=[
                pl.BlockSpec((block_b, N), lambda i: (i, 0)),   # preds tile
                pl.BlockSpec((block_b, 1), lambda i: (i, 0)),   # labels tile
            ],
            out_specs=pl.BlockSpec((block_b, 1), lambda i: (i, 0)),
        ),
        compiler_params=pltpu.CompilerParams(
            dimension_semantics=("parallel",),        # shard row tiles across TCs (v7x)
            vmem_limit_bytes=32 * 1024 * 1024,        # explicit, safe on v5e/v6e/v7x
        ),
    )(preds, labels2d)

    # tiny final reduction in XLA keeps the grid axis parallel-friendly
    return jnp.sum(per_row)


def smrr_loss_ref(preds, labels, anneal):
    """Pure-JAX reference mirroring the PyTorch forward exactly."""
    B, N = preds.shape
    preds = preds.astype(jnp.float32)
    label_value = preds[jnp.arange(B), labels]               # (B,)
    sim_diff = preds - label_value[:, None]                  # (B, N)
    exponent = jnp.clip(-sim_diff / anneal, -50.0, 50.0)
    sim_sg = 1.0 / (1.0 + jnp.exp(exponent))
    r = jnp.sum(sim_sg, axis=-1) + 1.0                       # (B,)
    k = K_CONST
    return jnp.sum((k * (1.0 - 1.0 / r) + r * jnp.log(r)) / (r + k))


if __name__ == "__main__":
    anneal = 0.05
    key = jax.random.PRNGKey(0)
    k1, k2, k3, k4 = jax.random.split(key, 4)

    # tolerance note: approx reciprocal (EUP vrcp) in the sigmoid introduces a
    # small per-element error, so compare at 1e-3 instead of 1e-5.
    RTOL = ATOL = 1e-3

    # Case 1: multi-tile parallel grid (B=32, block_b=8 -> 4 pipelined tiles)
    B1, N1 = 32, 256
    preds1 = jax.random.normal(k1, (B1, N1), dtype=jnp.float32)
    labels1 = jax.random.randint(k2, (B1,), 0, N1, dtype=jnp.int32)
    loss1 = jax.block_until_ready(smrr_loss_pallas(preds1, labels1, anneal, block_b=8))
    ref1 = smrr_loss_ref(preds1, labels1, anneal)
    assert jnp.allclose(loss1, ref1, rtol=RTOL, atol=ATOL), (loss1, ref1)

    # Case 2: batch not a multiple of the tile -> ragged grid, no wrapper pad
    B2, N2 = 20, 128
    preds2 = jax.random.normal(k3, (B2, N2), dtype=jnp.float32)
    labels2 = jax.random.randint(k4, (B2,), 0, N2, dtype=jnp.int32)
    loss2 = jax.block_until_ready(smrr_loss_pallas(preds2, labels2, anneal, block_b=8))
    ref2 = smrr_loss_ref(preds2, labels2, anneal)
    assert jnp.allclose(loss2, ref2, rtol=RTOL, atol=ATOL), (loss2, ref2)

    # Case 3: automatic (VMEM-budget-derived) tile size, single tile
    loss3 = jax.block_until_ready(smrr_loss_pallas(preds2[:8], labels2[:8], anneal))
    ref3 = smrr_loss_ref(preds2[:8], labels2[:8], anneal)
    assert jnp.allclose(loss3, ref3, rtol=RTOL, atol=ATOL), (loss3, ref3)

    # Case 4: bf16 preds streamed in native dtype, upcast in vregs
    preds4 = preds1.astype(jnp.bfloat16)
    loss4 = jax.block_until_ready(smrr_loss_pallas(preds4, labels1, anneal, block_b=16))
    ref4 = smrr_loss_ref(preds4, labels1, anneal)
    assert jnp.allclose(loss4, ref4, rtol=RTOL, atol=ATOL), (loss4, ref4)

    print("KERNEL_OK")
</pallas_src>

<mosaic_0001>
module attributes {stable_mosaic.version = 11 : i64} {
  func.func @kernel(%arg0: i32, %arg1: memref<8x256xf32, #tpu.memory_space<vmem>>, %arg2: memref<8x1xi32, #tpu.memory_space<vmem>>, %arg3: memref<8x1xf32, #tpu.memory_space<vmem>>) attributes {dimension_semantics = [#tpu.dimension_semantics<parallel>], iteration_bounds = array<i64: 4>, scalar_prefetch = 0 : i64, scratch_operands = 0 : i64, tpu.core_type = #tpu.core_type<tc>, window_params = [{transform_indices = @transform_0, window_bounds = array<i64: 8, 256>}, {transform_indices = @transform_1, window_bounds = array<i64: 8, 1>}, {transform_indices = @transform_2, window_bounds = array<i64: 8, 1>}]} {
    %c0 = arith.constant 0 : index
    %c0_0 = arith.constant 0 : index
    %0 = vector.load %arg1[%c0, %c0_0] : memref<8x256xf32, #tpu.memory_space<vmem>>, vector<8x256xf32>
    %c0_1 = arith.constant 0 : index
    %c0_2 = arith.constant 0 : index
    %1 = vector.load %arg2[%c0_1, %c0_2] : memref<8x1xi32, #tpu.memory_space<vmem>>, vector<8x1xi32>
    %2 = tpu.iota {dimensions = array<i32: 1>} : vector<8x256xi32>
    %3 = vector.broadcast %1 : vector<8x1xi32> to vector<8x256xi32>
    %4 = arith.cmpi eq, %2, %3 : vector<8x256xi32>
    %cst = arith.constant 0.000000e+00 : f32
    %5 = vector.broadcast %cst : f32 to vector<8x256xf32>
    %6 = arith.select %4, %0, %5 : vector<8x256xi1>, vector<8x256xf32>
    %cst_3 = arith.constant dense<0.000000e+00> : vector<8xf32>
    %7 = vector.multi_reduction <add>, %6, %cst_3 [1] : vector<8x256xf32> to vector<8xf32>
    %8 = vector.shape_cast %7 : vector<8xf32> to vector<8x1xf32>
    %9 = vector.broadcast %8 : vector<8x1xf32> to vector<8x256xf32>
    %10 = arith.subf %9, %0 : vector<8x256xf32>
    %cst_4 = arith.constant 2.000000e+01 : f32
    %11 = vector.broadcast %cst_4 : f32 to vector<8x256xf32>
    %12 = arith.mulf %10, %11 : vector<8x256xf32>
    %cst_5 = arith.constant -5.000000e+01 : f32
    %cst_6 = arith.constant 5.000000e+01 : f32
    %13 = vector.broadcast %cst_5 : f32 to vector<8x256xf32>
    %14 = arith.maximumf %13, %12 : vector<8x256xf32>
    %15 = vector.broadcast %cst_6 : f32 to vector<8x256xf32>
    %16 = arith.minimumf %15, %14 : vector<8x256xf32>
    %17 = math.exp %16 : vector<8x256xf32>
    %cst_7 = arith.constant 1.000000e+00 : f32
    %18 = vector.broadcast %cst_7 : f32 to vector<8x256xf32>
    %19 = arith.addf %18, %17 : vector<8x256xf32>
    %20 = tpu.reciprocal %19 {approx = true} : vector<8x256xf32> -> vector<8x256xf32>
    %cst_8 = arith.constant dense<0.000000e+00> : vector<8xf32>
    %21 = vector.multi_reduction <add>, %20, %cst_8 [1] : vector<8x256xf32> to vector<8xf32>
    %22 = vector.shape_cast %21 : vector<8xf32> to vector<8x1xf32>
    %cst_9 = arith.constant 1.000000e+00 : f32
    %23 = vector.broadcast %cst_9 : f32 to vector<8x1xf32>
    %24 = arith.addf %22, %23 : vector<8x1xf32>
    %cst_10 = arith.constant 1.000000e+00 : f32
    %25 = vector.broadcast %cst_10 : f32 to vector<8x1xf32>
    %26 = arith.divf %25, %24 : vector<8x1xf32>
    %cst_11 = arith.constant 1.000000e+00 : f32
    %27 = vector.broadcast %cst_11 : f32 to vector<8x1xf32>
    %28 = arith.subf %27, %26 : vector<8x1xf32>
    %cst_12 = arith.constant 3.000000e+04 : f32
    %29 = vector.broadcast %cst_12 : f32 to vector<8x1xf32>
    %30 = arith.mulf %29, %28 : vector<8x1xf32>
    %31 = math.log %24 : vector<8x1xf32>
    %32 = arith.mulf %24, %31 : vector<8x1xf32>
    %33 = arith.addf %30, %32 : vector<8x1xf32>
    %cst_13 = arith.constant 3.000000e+04 : f32
    %34 = vector.broadcast %cst_13 : f32 to vector<8x1xf32>
    %35 = arith.addf %24, %34 : vector<8x1xf32>
    %36 = arith.divf %33, %35 : vector<8x1xf32>
    %c0_14 = arith.constant 0 : index
    %c0_15 = arith.constant 0 : index
    %37 = vector.load %arg3[%c0_14, %c0_15] : memref<8x1xf32, #tpu.memory_space<vmem>>, vector<8x1xf32>
    tpu.vector_store %arg3[%c0_14, %c0_15], %36 {strides = array<i32>} : memref<8x1xf32, #tpu.memory_space<vmem>>, vector<8x1xf32>,
    return
  }
  func.func @transform_0(%arg0: i32) -> (i32, i32) {
    %c0_i32 = arith.constant 0 : i32
    %c0_i32_0 = arith.constant 0 : i32
    return %arg0, %c0_i32 : i32, i32
  }
  func.func @transform_1(%arg0: i32) -> (i32, i32) {
    %c0_i32 = arith.constant 0 : i32
    %c0_i32_0 = arith.constant 0 : i32
    return %arg0, %c0_i32 : i32, i32
  }
  func.func @transform_2(%arg0: i32) -> (i32, i32) {
    %c0_i32 = arith.constant 0 : i32
    %c0_i32_0 = arith.constant 0 : i32
    return %arg0, %c0_i32 : i32, i32
  }
}

</mosaic_0001>

<llo_original>
// kernel: tpu_custom_call.1
$region0: #{tpu_custom_call.1}
  #allocation0 [shape = 'u32[]', space=smem, size = 0x4, offset = 0x4, fixed_abs, tag = 'smem constant byte address 0x4 - core index']
  #allocation1 [shape = 'u32[72,128]{1,0:T(1,128)}', space=vmem, size = 0x9000, scoped, tag = 'internal scratch']
  %s0 = inlined_call_operand.hbm [shape: f32[32,256], index: 0, kind: input, shape index: {}]
  %s1 = inlined_call_operand.vmem [shape: s32[32,1], index: 1, kind: input, shape index: {}]
  %s2 = inlined_call_operand.vmem [shape: f32[32,1], index: 2, kind: output, shape index: {}]
  %s3 = sld [smem:[#allocation0]]
  $region45: #{tpu_custom_call.1} parent=0
    _
  %s5 = ssub.s32 1, %s3
  %s6 = scalar_select 0, %s5, %s3
  $region1: #{tpu_custom_call.1} parent=0
    #allocation2 [shape = 'u8[16384]{0}', space=vmem, size = 0x4000, scoped, tag = 'input window, operand 0']
    #allocation3 [shape = 's32[2]{0}', space=sflag, size = 0x8, scoped, tag = 'scoped memory for tpu_custom_call.1']
    %7 = vsyncpa [#allocation3], 0
    %s8 = scalar_lea.sflag [#allocation3], 1
    %9 = vsyncpa %s8, 0
    loop: start=0, step=1, limit=6
    $region2: #{tpu_custom_call.1} parent=1 // loop_pre_header
      _
    $region3: #{tpu_custom_call.1} parent=1 // loop_header
      %s11 = sphi 0, %s15
      %p12 = scmp.ge.s32.totalorder %s11, 6
      %s21 = sphi 0, %s23
      %s24 = sphi 0, %s21
      %s25 = sphi 0, %s24
      %s41 = sphi 0, %s25
      %s47 = sphi 0, %s49
      %s50 = sphi 0, %s47
      %s51 = sphi 0, %s50
      %s67 = sphi 0, %s51
      %s73 = sphi 0, %s75
      %s76 = sphi 0, %s73
      %s77 = sphi 0, %s76
      %s93 = sphi 0, %s77
    $region4: #{tpu_custom_call.1} parent=1 // loop_header_branch
      %14 = sbr.rel (%p12) target = $region8
    $region5: #{tpu_custom_call.1} parent=1 // loop_body
      %s16 = ssub.s32 %s11, 1
      %s17 = ssub.s32 %s11, 2
      %s18 = sadd.s32 %s11, 1
      %s19 = ssub.s32 %s11, %s18
      %p20 = scmp.eq.s32.totalorder %s19, 0
      %s22 = sadd.s32 %s21, 1
      %s23 = scalar_select %p20, %s21, %s22
      %p26 = pneg %p20
      %p27 = scmp.eq.s32.totalorder %s11, 3
      %p28 = por %p26, %p27
      %p29 = scmp.ne.s32.totalorder %s21, %s24
      %p30 = scmp.eq.s32.totalorder %s11, 0
      %p31 = por %p29, %p30
      %p32 = scmp.ne.s32.totalorder %s21, %s24
      %p33 = scmp.eq.s32.totalorder %s16, 3
      %p34 = por %p32, %p33
      %p35 = scmp.ne.s32.totalorder %s24, %s25
      %p36 = scmp.eq.s32.totalorder %s16, 0
      %p37 = por %p35, %p36
      %p38 = scmp.ne.s32.totalorder %s24, %s25
      %p39 = scmp.eq.s32.totalorder %s17, 3
      %p40 = por %p38, %p39
      %p42 = scmp.ne.s32.totalorder %s25, %s41
      %p43 = scmp.eq.s32.totalorder %s17, 0
      %p44 = por %p42, %p43
      %s45 = ssub.s32 %s11, %s18
      %p46 = scmp.eq.s32.totalorder %s45, 0
      %s48 = sadd.s32 %s47, 1
      %s49 = scalar_select %p46, %s47, %s48
      %p52 = pneg %p46
      %p53 = scmp.eq.s32.totalorder %s11, 3
      %p54 = por %p52, %p53
      %p55 = scmp.ne.s32.totalorder %s47, %s50
      %p56 = scmp.eq.s32.totalorder %s11, 0
      %p57 = por %p55, %p56
      %p58 = scmp.ne.s32.totalorder %s47, %s50
      %p59 = scmp.eq.s32.totalorder %s16, 3
      %p60 = por %p58, %p59
      %p61 = scmp.ne.s32.totalorder %s50, %s51
      %p62 = scmp.eq.s32.totalorder %s16, 0
      %p63 = por %p61, %p62
      %p64 = scmp.ne.s32.totalorder %s50, %s51
      %p65 = scmp.eq.s32.totalorder %s17, 3
      %p66 = por %p64, %p65
      %p68 = scmp.ne.s32.totalorder %s51, %s67
      %p69 = scmp.eq.s32.totalorder %s17, 0
      %p70 = por %p68, %p69
      %s71 = ssub.s32 %s11, %s18
      %p72 = scmp.eq.s32.totalorder %s71, 0
      %s74 = sadd.s32 %s73, 1
      %s75 = scalar_select %p72, %s73, %s74
      %p78 = pneg %p72
      %p79 = scmp.eq.s32.totalorder %s11, 3
      %p80 = por %p78, %p79
      %p81 = scmp.ne.s32.totalorder %s73, %s76
      %p82 = scmp.eq.s32.totalorder %s11, 0
      %p83 = por %p81, %p82
      %p84 = scmp.ne.s32.totalorder %s73, %s76
      %p85 = scmp.eq.s32.totalorder %s16, 3
      %p86 = por %p84, %p85
      %p87 = scmp.ne.s32.totalorder %s76, %s77
      %p88 = scmp.eq.s32.totalorder %s16, 0
      %p89 = por %p87, %p88
      %p90 = scmp.ne.s32.totalorder %s76, %s77
      %p91 = scmp.eq.s32.totalorder %s17, 3
      %p92 = por %p90, %p91
      %p94 = scmp.ne.s32.totalorder %s77, %s93
      %p95 = scmp.eq.s32.totalorder %s17, 0
      %p96 = por %p94, %p95
      %p97 = scmp.le.s32.totalorder 1, %s11
      %p98 = scmp.lt.s32.totalorder %s11, 5
      %p99 = pnand %p97, %p98
      %p100 = pneg %p99
      // Predicated region
      $region9: #{tpu_custom_call.1} parent=5 // pred_check
        _
      $region10: #{tpu_custom_call.1} parent=5 // pred_check_branch
        %102 = sbr.rel (%p99) target = $region12
      $region11: #{tpu_custom_call.1} parent=5 // pred_region
        %s103 = ssub.s32 %s11, 1
      $region12: #{tpu_custom_call.1} parent=5 // pred_fallthru
        _
      %p104 = scmp.lt.s32.totalorder %s11, 4
      // Predicated region
      $region13: #{tpu_custom_call.1} parent=5 // pred_check
        %p105 = pneg %p104
      $region14: #{tpu_custom_call.1} parent=5 // pred_check_branch
        %107 = sbr.rel (%p105) target = $region16
      $region15: #{tpu_custom_call.1} parent=5 // pred_region
        // Predicated region
        $region17: #{tpu_custom_call.1} parent=15 // pred_check
          %p108 = pneg %p31
        $region18: #{tpu_custom_call.1} parent=15 // pred_check_branch
          %110 = sbr.rel (%p108) target = $region20
        $region19: #{tpu_custom_call.1} parent=15 // pred_region
          %s111 = sand.u32 %s21, 1
          %s112 = scalar_lea.sflag [#allocation3], %s111
          %s113 = sand.u32 %s21, 1
          %s114 = smul.addr %s113, 16
          %s115 = scalar_lea.vmem [#allocation2], %s114
          %117 = vsyncadd %s112, 0
          %s118 = smul.addr %s11, 2
          %s119 = smul.addr %s118, 8
          %s120 = scalar_lea.hbm %s0, %s119
          %s122 = sshll.u32 %s120, 4
          %s123 = int_to_ptr.hbm [resolvable:$true] %s122
          %s124 = sshll.u32 %s115, 4
          %s125 = int_to_ptr.vmem [resolvable:$true] %s124
          %127 = dma.hbm_to_vmem [thread:$0]  %s123, 256, %s125, %s112
        $region20: #{tpu_custom_call.1} parent=15 // pred_fallthru
          _
        // Predicated region
        $region21: #{tpu_custom_call.1} parent=15 // pred_check
          %p128 = pneg %p57
        $region22: #{tpu_custom_call.1} parent=15 // pred_check_branch
          %130 = sbr.rel (%p128) target = $region24
        $region23: #{tpu_custom_call.1} parent=15 // pred_region
          %p131 = scmp.lt.s32.totalorder %s11, 3
          %s132 = scalar_select %p131, %s11, 3
          %s133 = smul.addr %s132, 8
          %s134 = scalar_lea.vmem %s1, %s133
        $region24: #{tpu_custom_call.1} parent=15 // pred_fallthru
          _
      $region16: #{tpu_custom_call.1} parent=5 // pred_fallthru
        _
      %p135 = scmp.le.s32.totalorder 1, %s11
      %p136 = scmp.lt.s32.totalorder %s11, 5
      %p137 = pnand %p135, %p136
      %p138 = pneg %p137
      // Predicated region
      $region25: #{tpu_custom_call.1} parent=5 // pred_check
        _
      $region26: #{tpu_custom_call.1} parent=5 // pred_check_branch
        %140 = sbr.rel (%p137) target = $region28
      $region27: #{tpu_custom_call.1} parent=5 // pred_region
        %s141 = ssub.s32 %s11, 1
        %s142 = sand.u32 %s24, 1
        %s143 = scalar_lea.sflag [#allocation3], %s142
        %s144 = sand.u32 %s24, 1
        %s145 = smul.addr %s144, 16
        %s146 = scalar_lea.vmem [#allocation2], %s145
        // Predicated region
        $region29: #{tpu_custom_call.1} parent=27 // pred_check
          %p147 = pneg %p37
        $region30: #{tpu_custom_call.1} parent=27 // pred_check_branch
          %149 = sbr.rel (%p147) target = $region32
        $region31: #{tpu_custom_call.1} parent=27 // pred_region
          %151 = dma.done %s143, 256
        $region32: #{tpu_custom_call.1} parent=27 // pred_fallthru
          _
        %s152 = sand.u32 %s24, 1
        %s153 = scalar_lea.sflag [#allocation3], %s152
        %s154 = sand.u32 %s24, 1
        %s155 = smul.addr %s154, 16
        %s156 = scalar_lea.vmem [#allocation2], %s155
        %p157 = pneg %p37
        %p158 = pneg %p34
        %p159 = scmp.lt.s32.totalorder %s16, 3
        %s160 = scalar_select %p159, %s16, 3
        %s161 = smul.addr %s160, 8
        %s162 = scalar_lea.vmem %s1, %s161
        %p163 = pneg %p63
        %p164 = pneg %p60
        %p165 = pneg %p89
        %p166 = pneg %p86
        %p167 = scmp.lt.s32.totalorder %s16, 3
        %s168 = scalar_select %p167, %s16, 3
        %s169 = smul.addr %s168, 8
        %s170 = scalar_lea.vmem %s2, %s169
        %p171 = scmp.lt.s32.totalorder %s16, 3
        %s172 = scalar_select %p171, %s16, 3
        %s173 = smul.addr %s172, 8
        %s174 = scalar_lea.vmem %s1, %s173
        %p175 = scmp.lt.s32.totalorder %s16, 3
        %s176 = scalar_select %p175, %s16, 3
        %s177 = smul.addr %s176, 8
        %s178 = scalar_lea.vmem %s2, %s177
        %v179 = vld [vmem:[%s146] sm:$0xff]
        %v180 = vld [vmem:[%s146 + $0x8] sm:$0xff]
        %v181 = vld [vmem:[%s174] sm:$0xff]
        %v182 = vlaneseq
        %v183 = vand.u32 %v182, 127
        %v184 = vadd.s32 %v183, 128
        %185 = vset.pattern.permute.xlu0 0
        %186 = vperm.xlu0 %185, %v181
        %v187 = vpop.permute.xlu0 %186
        %vm188 = vcmp.eq.s32.totalorder %v183, %v187
        %vm189 = vcmp.eq.s32.totalorder %v184, %v187
        %v190 = vsel %vm188, %v179, 0.0
        %v191 = vsel %vm189, %v180, 0.0
        %v192 = vadd.f32 %v190, %v191
        %193 = vadd.xlane.f32.xlu0 %v192
        %v194 = vpop.xlane.xlu0 %193
        %v195 = vsub.f32 %v194, %v179
        %v196 = vsub.f32 %v194, %v180
        %v197 = vmul.f32 %v195, 20.0
        %v198 = vmul.f32 %v196, 20.0
        %v199 = vmax.f32 %v197, -50.0
        %v200 = vmax.f32 %v198, -50.0
        %v201 = vmin.f32 %v199, 50.0
        %v202 = vmin.f32 %v200, 50.0
        %v203 = vmul.f32 %v201, 1.442695
        %v204 = vpow.pop %v203
        %v205 = vmul.f32 %v202, 1.442695
        %v206 = vpow.pop %v205
        %v207 = vadd.f32 %v204, 1.0
        %v208 = vadd.f32 %v206, 1.0
        %v209 = vrcp.pop %v207
        %v210 = vrcp.pop %v208
        %v211 = vadd.f32 %v209, %v210
        %212 = vadd.xlane.f32.xlu0 %v211
        %v213 = vpop.xlane.xlu0 %212
        %v214 = vadd.f32 %v213, 1.0
        %v215 = vrcp.pop %v214
        %v216 = vmul.f32 %v214, %v215
        %v217 = vsub.f32 1.0, %v216
        %v218 = vmul.f32 %v215, %v217
        %v219 = vadd.f32 %v215, %v218
        %vm220 = vweird.f32 %v214
        %vm221 = vweird.f32 %v215
        %vm222 = vmor %vm220, %vm221
        %v223 = vsel %vm222, %v215, %v219
        %v224 = vand.u32 2147483647, %v214
        %vm225 = vcmp.eq.f32.partialorder %v224, 8.507059e+37
        %v226 = vand.u32 %v214, 2147483648
        %v227 = vor.u32 1.1754944e-38, %v226
        %v228 = vsel %vm225, %v227, %v223
        %v229 = vmul.f32 1.0, %v228
        %v230 = vsub.f32 1.0, %v229
        %v231 = vmul.f32 %v230, 30000.0
        %v232 = vlog2.pop %v214
        %v233 = vmul.f32 %v232, 0.6931472
        %v234 = vmul.f32 %v214, %v233
        %v235 = vadd.f32 %v231, %v234
        %v236 = vadd.f32 %v214, 30000.0
        %v237 = vrcp.pop %v236
        %v238 = vmul.f32 %v236, %v237
        %v239 = vsub.f32 1.0, %v238
        %v240 = vmul.f32 %v237, %v239
        %v241 = vadd.f32 %v237, %v240
        %vm242 = vweird.f32 %v236
        %vm243 = vweird.f32 %v237
        %vm244 = vmor %vm242, %vm243
        %v245 = vsel %vm244, %v237, %v241
        %v246 = vand.u32 2147483647, %v236
        %vm247 = vcmp.eq.f32.partialorder %v246, 8.507059e+37
        %v248 = vand.u32 %v236, 2147483648
        %v249 = vor.u32 1.1754944e-38, %v248
        %v250 = vsel %vm247, %v249, %v245
        %v251 = vmul.f32 %v235, %v250
        %vm252 = vcmask 7168
        %253 = vst.msk [vmem:[%s178] sm:$0xff] %vm252, %v251
        %p254 = scmp.lt.s32.totalorder %s16, 3
        %s255 = scalar_select %p254, %s16, 3
        %s256 = smul.addr %s255, 8
        %s257 = scalar_lea.vmem %s2, %s256
        // Predicated region
        $region33: #{tpu_custom_call.1} parent=27 // pred_check
          %p258 = pneg %p86
        $region34: #{tpu_custom_call.1} parent=27 // pred_check_branch
          %260 = sbr.rel (%p258) target = $region36
        $region35: #{tpu_custom_call.1} parent=27 // pred_region
          _
        $region36: #{tpu_custom_call.1} parent=27 // pred_fallthru
          _
      $region28: #{tpu_custom_call.1} parent=5 // pred_fallthru
        _
      %p261 = scmp.le.s32.totalorder 2, %s11
      // Predicated region
      $region37: #{tpu_custom_call.1} parent=5 // pred_check
        %p262 = pneg %p261
      $region38: #{tpu_custom_call.1} parent=5 // pred_check_branch
        %264 = sbr.rel (%p262) target = $region40
      $region39: #{tpu_custom_call.1} parent=5 // pred_region
        %s265 = ssub.s32 %s11, 2
        // Predicated region
        $region41: #{tpu_custom_call.1} parent=39 // pred_check
          %p266 = pneg %p92
        $region42: #{tpu_custom_call.1} parent=39 // pred_check_branch
          %268 = sbr.rel (%p266) target = $region44
        $region43: #{tpu_custom_call.1} parent=39 // pred_region
          %p269 = scmp.lt.s32.totalorder %s17, 3
          %s270 = scalar_select %p269, %s17, 3
          %s271 = smul.addr %s270, 8
          %s272 = scalar_lea.vmem %s2, %s271
        $region44: #{tpu_custom_call.1} parent=39 // pred_fallthru
          _
      $region40: #{tpu_custom_call.1} parent=5 // pred_fallthru
        _
    $region6: #{tpu_custom_call.1} parent=1 // loop_footer
      %s15 = sadd.s32 1, %s11
    $region7: #{tpu_custom_call.1} parent=1 // loop_footer_branch
      %10 = sbr.rel target = $region3
    $region8: #{tpu_custom_call.1} parent=1 // loop_exit
      _
    %273 = vsyncpa [#allocation3], 1
    %s274 = scalar_lea.sflag [#allocation3], 1
    %275 = vsyncpa %s274, 1

</llo_original>
